<compile_context>
chip_gen: v7x
topology: tpu7x:2x2x1
jax: 0.10.0
libtpu: 0.0.40
codegen_flags: <defaults>
</compile_context>

<pallas_src>
import jax
import jax.numpy as jnp
from jax import lax
from jax.experimental import pallas as pl
from jax.experimental.pallas import tpu as pltpu

LANES = 128
SUBLANES = 8


def mse_loss(x, y, *, tile_rows=4096):
    """torch.mean((x - y) ** 2) for arbitrarily shaped, equal-shape inputs."""
    assert x.shape == y.shape, (x.shape, y.shape)
    n = x.size
    assert n > 0

    # dtype-aware sublane packing: 8 for 4-byte, 16 for 2-byte, 32 for 1-byte.
    itemsize = min(jnp.dtype(x.dtype).itemsize, jnp.dtype(y.dtype).itemsize)
    pack = max(SUBLANES, 32 // max(1, itemsize))

    rows = pl.cdiv(n, LANES)

    # Tile rows: multiple of the packing, capped so tiny inputs stay one tile.
    rows_ceil = ((rows + pack - 1) // pack) * pack
    tr = min(int(tile_rows), rows_ceil)
    tr = max(pack, (tr // pack) * pack)

    blocks_total = pl.cdiv(rows, tr)
    # v7x has 2 TensorCores; a "parallel" leading axis shards the stream across
    # them.  On single-TC chips it just runs sequentially (no cost).
    ncores = 2 if blocks_total >= 2 else 1
    steps = pl.cdiv(blocks_total, ncores)

    xf = jnp.ravel(x)
    yf = jnp.ravel(y)
    lane_rem = rows * LANES - n
    if lane_rem:
        # Only the <128-element lane remainder is padded (never up to a tile
        # multiple).  Zeros are exact for MSE; rows are masked in-kernel.
        xf = jnp.pad(xf, (0, lane_rem))
        yf = jnp.pad(yf, (0, lane_rem))
    x2 = xf.reshape(rows, LANES)
    y2 = yf.reshape(rows, LANES)

    def kernel(x_ref, y_ref, o_ref):
        c = pl.program_id(0)
        i = pl.program_id(1)

        @pl.when(i == 0)
        def _():
            o_ref[...] = jnp.zeros_like(o_ref)

        # Unclamped linear block index -> used for the validity mask so that
        # (a) garbage rows of the edge block and (b) the clamped duplicate
        # trailing step on the last core both contribute exactly 0.
        row_base = (c * steps + i) * tr

        d = x_ref[...].astype(jnp.float32) - y_ref[...].astype(jnp.float32)
        sq = d * d

        # Row-level mask is sufficient: the <128-element lane remainder was
        # zero-padded (exact for MSE), so only whole invalid rows need masking.
        row_idx = lax.broadcasted_iota(jnp.int32, (tr, LANES), 0)
        sq = jnp.where(row_base + row_idx < rows, sq, 0.0)

        # Sublane-group partial sums: pure vreg adds into the resident (8,128)
        # accumulator block; no per-step XLU reduce or masked sub-vreg store.
        o_ref[...] += jnp.sum(sq.reshape(tr // SUBLANES, SUBLANES, LANES),
                              axis=0)

    def in_index(c, i):
        # Clamp so the DMA of the (possibly duplicated) trailing step on the
        # last core stays in bounds; its contribution is masked to zero above.
        return (jnp.minimum(c * steps + i, blocks_total - 1), 0)

    partial = pl.pallas_call(
        kernel,
        grid=(ncores, steps),
        in_specs=[
            pl.BlockSpec((tr, LANES), in_index),
            pl.BlockSpec((tr, LANES), in_index),
        ],
        # Per-core (8,128) accumulator row-block, resident across the
        # reduction ("arbitrary") axis; lane-dense and fully (8,128)-tiled.
        out_specs=pl.BlockSpec((SUBLANES, LANES), lambda c, i: (c, 0)),
        out_shape=jax.ShapeDtypeStruct((ncores * SUBLANES, LANES), jnp.float32),
        compiler_params=pltpu.CompilerParams(
            dimension_semantics=("parallel", "arbitrary"),
            # 2 inputs x 2 buffers x tile + elementwise temporaries stays well
            # under 40 MiB at the default tile; 40 MiB is safe on all of
            # v5e/v6e (128 MiB VMEM) and v7x (64 MiB VMEM).
            vmem_limit_bytes=40 * 1024 * 1024,
        ),
    )(x2, y2)

    return jnp.sum(partial) / n


def _mse_ref(x, y):
    xf = x.astype(jnp.float32)
    yf = y.astype(jnp.float32)
    return jnp.mean((xf - yf) ** 2)


def _check(got, want, tol):
    got = float(got)
    want = float(want)
    assert abs(got - want) < tol * max(1.0, abs(want)), (got, want)


if __name__ == "__main__":
    key = jax.random.PRNGKey(0)
    k1, k2, k3, k4 = jax.random.split(key, 4)

    # Primary test: shape consistent with an image batch (B, C, H, W).
    x = jax.random.normal(k1, (2, 4, 16, 16), dtype=jnp.float32)
    y = jax.random.normal(k2, (2, 4, 16, 16), dtype=jnp.float32)
    loss = jax.block_until_ready(mse_loss(x, y))
    assert jnp.isfinite(loss), "non-finite loss"
    _check(loss, _mse_ref(x, y), 1e-5)

    # Ragged size (exercises lane-remainder pad + edge-block masking).
    xr = jax.random.normal(k3, (3, 5, 17, 9), dtype=jnp.float32)
    yr = jax.random.normal(k4, (3, 5, 17, 9), dtype=jnp.float32)
    _check(mse_loss(xr, yr), _mse_ref(xr, yr), 1e-5)

    # Same ragged input with a tiny tile to force the multi-block path,
    # the 2-way "parallel" split and the clamped duplicate trailing step.
    _check(mse_loss(xr, yr, tile_rows=8), _mse_ref(xr, yr), 1e-5)

    # bf16 inputs: native-dtype streaming + 16-row sublane packing.
    xb = x.astype(jnp.bfloat16)
    yb = y.astype(jnp.bfloat16)
    _check(mse_loss(xb, yb), _mse_ref(xb, yb), 2e-2)

    print("KERNEL_OK")
</pallas_src>

<mosaic_0001>
module attributes {stable_mosaic.version = 11 : i64} {
  func.func @kernel(%arg0: i32, %arg1: i32, %arg2: memref<16x128xf32, #tpu.memory_space<vmem>>, %arg3: memref<16x128xf32, #tpu.memory_space<vmem>>, %arg4: memref<8x128xf32, #tpu.memory_space<vmem>>) attributes {dimension_semantics = [#tpu.dimension_semantics<parallel>, #tpu.dimension_semantics<arbitrary>], iteration_bounds = array<i64: 1, 1>, scalar_prefetch = 0 : i64, scratch_operands = 0 : i64, tpu.core_type = #tpu.core_type<tc>, window_params = [{transform_indices = @transform_0, window_bounds = array<i64: 16, 128>}, {transform_indices = @transform_1, window_bounds = array<i64: 16, 128>}, {transform_indices = @transform_2, window_bounds = array<i64: 8, 128>}]} {
    %c0_i32 = arith.constant 0 : i32
    %0 = arith.cmpi eq, %arg1, %c0_i32 : i32
    %1 = arith.extui %0 : i1 to i32
    %c0_i32_0 = arith.constant 0 : i32
    %2 = arith.cmpi ne, %1, %c0_i32_0 : i32
    scf.if %2 {
      %cst_10 = arith.constant 0.000000e+00 : f32
      %22 = vector.broadcast %cst_10 : f32 to vector<8x128xf32>
      %c0_11 = arith.constant 0 : index
      %c0_12 = arith.constant 0 : index
      %23 = vector.load %arg4[%c0_11, %c0_12] : memref<8x128xf32, #tpu.memory_space<vmem>>, vector<8x128xf32>
      tpu.vector_store %arg4[%c0_11, %c0_12], %22 {strides = array<i32>} : memref<8x128xf32, #tpu.memory_space<vmem>>, vector<8x128xf32>,
    } else {
    }
    %c1_i32 = arith.constant 1 : i32
    %3 = arith.muli %arg0, %c1_i32 : i32
    %4 = arith.addi %3, %arg1 : i32
    %c16_i32 = arith.constant 16 : i32
    %5 = arith.muli %4, %c16_i32 : i32
    %c0 = arith.constant 0 : index
    %c0_1 = arith.constant 0 : index
    %6 = vector.load %arg2[%c0, %c0_1] : memref<16x128xf32, #tpu.memory_space<vmem>>, vector<16x128xf32>
    %c0_2 = arith.constant 0 : index
    %c0_3 = arith.constant 0 : index
    %7 = vector.load %arg3[%c0_2, %c0_3] : memref<16x128xf32, #tpu.memory_space<vmem>>, vector<16x128xf32>
    %8 = arith.subf %6, %7 : vector<16x128xf32>
    %9 = arith.mulf %8, %8 : vector<16x128xf32>
    %10 = tpu.iota {dimensions = array<i32: 0>} : vector<16x128xi32>
    %11 = vector.broadcast %5 : i32 to vector<16x128xi32>
    %12 = arith.addi %11, %10 : vector<16x128xi32>
    %c16_i32_4 = arith.constant 16 : i32
    %13 = vector.broadcast %c16_i32_4 : i32 to vector<16x128xi32>
    %14 = arith.cmpi slt, %12, %13 : vector<16x128xi32>
    %cst = arith.constant 0.000000e+00 : f32
    %15 = vector.broadcast %cst : f32 to vector<16x128xf32>
    %16 = arith.select %14, %9, %15 : vector<16x128xi1>, vector<16x128xf32>
    %c0_5 = arith.constant 0 : index
    %c0_6 = arith.constant 0 : index
    %17 = vector.load %arg4[%c0_5, %c0_6] : memref<8x128xf32, #tpu.memory_space<vmem>>, vector<8x128xf32>
    %18 = vector.shape_cast %16 : vector<16x128xf32> to vector<2x8x128xf32>
    %cst_7 = arith.constant dense<0.000000e+00> : vector<8x128xf32>
    %19 = vector.multi_reduction <add>, %18, %cst_7 [0] : vector<2x8x128xf32> to vector<8x128xf32>
    %20 = arith.addf %17, %19 : vector<8x128xf32>
    %c0_8 = arith.constant 0 : index
    %c0_9 = arith.constant 0 : index
    %21 = vector.load %arg4[%c0_8, %c0_9] : memref<8x128xf32, #tpu.memory_space<vmem>>, vector<8x128xf32>
    tpu.vector_store %arg4[%c0_8, %c0_9], %20 {strides = array<i32>} : memref<8x128xf32, #tpu.memory_space<vmem>>, vector<8x128xf32>,
    return
  }
  func.func @transform_0(%arg0: i32, %arg1: i32) -> (i32, i32) {
    %c1_i32 = arith.constant 1 : i32
    %0 = arith.muli %arg0, %c1_i32 : i32
    %1 = arith.addi %0, %arg1 : i32
    %c0_i32 = arith.constant 0 : i32
    %2 = arith.minsi %1, %c0_i32 : i32
    %c0_i32_0 = arith.constant 0 : i32
    %c0_i32_1 = arith.constant 0 : i32
    return %2, %c0_i32_0 : i32, i32
  }
  func.func @transform_1(%arg0: i32, %arg1: i32) -> (i32, i32) {
    %c1_i32 = arith.constant 1 : i32
    %0 = arith.muli %arg0, %c1_i32 : i32
    %1 = arith.addi %0, %arg1 : i32
    %c0_i32 = arith.constant 0 : i32
    %2 = arith.minsi %1, %c0_i32 : i32
    %c0_i32_0 = arith.constant 0 : i32
    %c0_i32_1 = arith.constant 0 : i32
    return %2, %c0_i32_0 : i32, i32
  }
  func.func @transform_2(%arg0: i32, %arg1: i32) -> (i32, i32) {
    %c0_i32 = arith.constant 0 : i32
    %c0_i32_0 = arith.constant 0 : i32
    return %arg0, %c0_i32 : i32, i32
  }
}

</mosaic_0001>

<llo_original>
// kernel: tpu_custom_call.1
$region0: #{tpu_custom_call.1}
  #allocation0 [shape = 'u32[]', space=smem, size = 0x4, offset = 0x4, fixed_abs, tag = 'smem constant byte address 0x4 - core index']
  #allocation1 [shape = 'u32[144,128]{1,0:T(1,128)}', space=vmem, size = 0x12000, scoped, tag = 'internal scratch']
  %s0 = inlined_call_operand.hbm [shape: f32[16,128], index: 0, kind: input, shape index: {}]
  %s1 = inlined_call_operand.hbm [shape: f32[16,128], index: 1, kind: input, shape index: {}]
  %s2 = inlined_call_operand.hbm [shape: f32[8,128], index: 2, kind: output, shape index: {}]
  %s3 = sld [smem:[#allocation0]]
  $region30: #{tpu_custom_call.1} parent=0
    _
  %s5 = ssub.s32 1, %s3
  %s6 = scalar_select 0, %s5, %s3
  $region1: #{tpu_custom_call.1} parent=0
    #allocation2 [shape = 'u8[8192]{0}', space=vmem, size = 0x2000, scoped, tag = 'input window, operand 0, single buffered']
    #allocation3 [shape = 's32[1]{0}', space=sflag, size = 0x4, scoped, tag = 'scoped memory for tpu_custom_call.1']
    #allocation4 [shape = 's32[1]{0}', space=sflag, size = 0x4, scoped, tag = 'scoped memory for tpu_custom_call.1']
    #allocation5 [shape = 'u8[8192]{0}', space=vmem, size = 0x2000, scoped, tag = 'input window, operand 1, single buffered']
    #allocation6 [shape = 's32[1]{0}', space=sflag, size = 0x4, scoped, tag = 'scoped memory for tpu_custom_call.1']
    #allocation7 [shape = 'u8[4096]{0}', space=vmem, size = 0x1000, scoped, tag = 'output window, operand 0, single buffered']
    %7 = vsyncpa [#allocation3], 0
    %8 = vsyncpa [#allocation6], 0
    %9 = vsyncpa [#allocation4], 0
    // Predicated region
    $region2: #{tpu_custom_call.1} parent=1 // pred_check
      _
    $region3: #{tpu_custom_call.1} parent=1 // pred_check_branch
      %11 = sbr.rel (0) target = $region5
    $region4: #{tpu_custom_call.1} parent=1 // pred_region
      %s12 = sadd.s32 0, 0
      %p13 = scmp.lt.s32.totalorder %s12, 0
      %s14 = scalar_select %p13, %s12, 0
      %s15 = smul.u32 2, %s14
      %s17 = ssub.s32 256, 256
      %18 = vsyncadd [#allocation3], %s17
      %s19 = smul.addr %s15, 128
      %s20 = scalar_lea.hbm %s0, %s19
      %s21 = sshll.u32 [#allocation2], 4
      %s22 = int_to_ptr.vmem [resolvable:$true] %s21
      %27 = dma.hbm_to_vmem [thread:$0]  %s20, 256, %s22, [#allocation3], 128, 128, 8
    $region5: #{tpu_custom_call.1} parent=1 // pred_fallthru
      _
    // Predicated region
    $region6: #{tpu_custom_call.1} parent=1 // pred_check
      _
    $region7: #{tpu_custom_call.1} parent=1 // pred_check_branch
      %29 = sbr.rel (0) target = $region9
    $region8: #{tpu_custom_call.1} parent=1 // pred_region
      %s30 = sadd.s32 0, 0
      %p31 = scmp.lt.s32.totalorder %s30, 0
      %s32 = scalar_select %p31, %s30, 0
      %s33 = smul.u32 2, %s32
      %s35 = ssub.s32 256, 256
      %36 = vsyncadd [#allocation6], %s35
      %s37 = smul.addr %s33, 128
      %s38 = scalar_lea.hbm %s1, %s37
      %s39 = sshll.u32 [#allocation5], 4
      %s40 = int_to_ptr.vmem [resolvable:$true] %s39
      %45 = dma.hbm_to_vmem [thread:$0]  %s38, 256, %s40, [#allocation6], 128, 128, 8
    $region9: #{tpu_custom_call.1} parent=1 // pred_fallthru
      _
    // Predicated region
    $region10: #{tpu_custom_call.1} parent=1 // pred_check
      _
    $region11: #{tpu_custom_call.1} parent=1 // pred_check_branch
      %47 = sbr.rel (0) target = $region13
    $region12: #{tpu_custom_call.1} parent=1 // pred_region
      %48 = dma.done [#allocation3], 256
    $region13: #{tpu_custom_call.1} parent=1 // pred_fallthru
      _
    // Predicated region
    $region14: #{tpu_custom_call.1} parent=1 // pred_check
      _
    $region15: #{tpu_custom_call.1} parent=1 // pred_check_branch
      %50 = sbr.rel (0) target = $region17
    $region16: #{tpu_custom_call.1} parent=1 // pred_region
      %51 = dma.done [#allocation6], 256
    $region17: #{tpu_custom_call.1} parent=1 // pred_fallthru
      _
    %s52 = sadd.s32 0, 0
    %p53 = scmp.lt.s32.totalorder %s52, 0
    %s54 = scalar_select %p53, %s52, 0
    %s55 = smul.u32 2, %s54
    %s56 = sadd.s32 0, 0
    %p57 = scmp.lt.s32.totalorder %s56, 0
    %s58 = scalar_select %p57, %s56, 0
    %s59 = smul.u32 2, %s58
    %p60 = scmp.eq.s32.totalorder 0, 0
    // Predicated region
    $region18: #{tpu_custom_call.1} parent=1 // pred_check
      %p61 = pneg %p60
    $region19: #{tpu_custom_call.1} parent=1 // pred_check_branch
      %63 = sbr.rel (%p61) target = $region21
    $region20: #{tpu_custom_call.1} parent=1 // pred_region
      %64 = vst [vmem:[#allocation7] sm:$0xff] 0.0
    $region21: #{tpu_custom_call.1} parent=1 // pred_fallthru
      _
    %s65 = sadd.s32 0, 0
    %s66 = smul.u32 %s65, 16
    %v67 = vld [vmem:[#allocation2] sm:$0xff]
    %v68 = vld [vmem:[#allocation2 + $0x8] sm:$0xff]
    %v69 = vld [vmem:[#allocation5] sm:$0xff]
    %v70 = vld [vmem:[#allocation5 + $0x8] sm:$0xff]
    %v71 = vsub.f32 %v67, %v69
    %v72 = vsub.f32 %v68, %v70
    %v73 = vmul.f32 %v71, %v71
    %v74 = vmul.f32 %v72, %v72
    %v75 = vlaneseq
    %v76 = vshrl.u32 %v75, 7
    %v77 = vadd.s32 %v76, 8
    %v78 = vstv %s66
    %v79 = vadd.s32 %v78, %v76
    %v80 = vadd.s32 %v78, %v77
    %vm81 = vcmp.lt.s32.totalorder %v79, 16
    %vm82 = vcmp.lt.s32.totalorder %v80, 16
    %v83 = vsel %vm81, %v73, 0.0
    %v84 = vsel %vm82, %v74, 0.0
    %v85 = vld [vmem:[#allocation7] sm:$0xff]
    %v86 = vadd.f32 %v83, %v84
    %v87 = vadd.f32 %v85, %v86
    %88 = vst [vmem:[#allocation7] sm:$0xff] %v87
    // Predicated region
    $region22: #{tpu_custom_call.1} parent=1 // pred_check
      _
    $region23: #{tpu_custom_call.1} parent=1 // pred_check_branch
      %90 = sbr.rel (0) target = $region25
    $region24: #{tpu_custom_call.1} parent=1 // pred_region
      %s92 = ssub.s32 128, 128
      %93 = vsyncadd [#allocation4], %s92
      %s95 = sshll.u32 [#allocation7], 4
      %s96 = int_to_ptr.vmem [resolvable:$true] %s95
      %98 = dma.vmem_to_hbm [thread:$0]  %s96, 128, %s2, [#allocation4]
    $region25: #{tpu_custom_call.1} parent=1 // pred_fallthru
      _
    // Predicated region
    $region26: #{tpu_custom_call.1} parent=1 // pred_check
      _
    $region27: #{tpu_custom_call.1} parent=1 // pred_check_branch
      %100 = sbr.rel (0) target = $region29
    $region28: #{tpu_custom_call.1} parent=1 // pred_region
      %101 = dma.done [#allocation4], 128
    $region29: #{tpu_custom_call.1} parent=1 // pred_fallthru
      _
    %102 = vsyncpa [#allocation3], 1
    %103 = vsyncpa [#allocation6], 1
    %104 = vsyncpa [#allocation4], 1

</llo_original>
